<compile_context>
chip_gen: v6e
topology: v6e:2x2x1
jax: 0.10.0
libtpu: 0.0.40
codegen_flags: <defaults>
</compile_context>

<pallas_src>
import functools
import numpy as np
import jax
import jax.numpy as jnp
from jax.experimental import pallas as pl
from jax.experimental.pallas import tpu as pltpu


# VMEM budgets (bytes).  Sized for v7x (32 MiB scoped default / 64 MiB physical); v5e/v6e
# have more headroom but the same settings are safe and near-optimal there too.
_K13_VMEM_BUDGET = 24 * 1024 * 1024   # target working set for K1/K3 row tiles
_K2_SLAB_BUDGET = 8 * 1024 * 1024     # target for one head-chunk of (cc, Nt, Mt) slabs
_VMEM_LIMIT = 28 * 1024 * 1024        # explicit scoped-VMEM limit for all kernels


# ----------------------------- in-kernel helpers -----------------------------

def _layernorm(x, g, b, eps=1e-5):
    mu = jnp.mean(x, axis=-1, keepdims=True)
    xc = x - mu
    var = jnp.mean(xc * xc, axis=-1, keepdims=True)        # biased var (torch LayerNorm)
    return xc * jax.lax.rsqrt(var + eps) * g + b


def _gelu_tanh(x):
    # TODO(synk): nn.GELU() default is the exact erf form; the tanh approximation is used
    # here (1 EUP transcendental/elt; |err| ~ 1e-3 vs the erf reference).
    c = 0.7978845608028654  # sqrt(2/pi)
    return 0.5 * x * (1.0 + jnp.tanh(c * (x + 0.044715 * x * x * x)))


def _prod_axis1(x):
    """Product over axis 1 of a rank-4 (G, D, N, M) tensor.

    Tree-fold for power-of-two D (log2(D) lane-dense VPU multiplies over (N, M) slabs),
    sequential fold otherwise.  (N, M) always stays on the (sublane, lane) axes.
    """
    d = x.shape[1]
    if d & (d - 1):
        acc = x[:, 0]
        for i in range(1, d):
            acc = acc * x[:, i]
        return acc
    while x.shape[1] > 1:
        half = x.shape[1] // 2
        x = x[:, :half] * x[:, half:]
    return x[:, 0]


# --------------------------------- kernels -----------------------------------

def _ln_qkv_kernel(x_ref, g_ref, b_ref, w_ref, bias_ref, q_ref, k_ref, v_ref):
    # Fused: LayerNorm1 + qkv linear.  bf16 MXU inputs, f32 accumulation.
    # q and k are written channel-major (C, nt); the transpose runs on the XLU, which is
    # otherwise idle in this MXU/DMA-bound kernel.
    x = x_ref[0]                                                        # (nt, C) f32
    y = _layernorm(x, g_ref[...], b_ref[...])
    qkv = jnp.dot(y.astype(jnp.bfloat16), w_ref[...],
                  preferred_element_type=jnp.float32) + bias_ref[...]   # (nt, 3C) f32
    C = x.shape[-1]
    qk_t = qkv[:, :2 * C].T                                             # (2C, nt)
    q_ref[0] = qk_t[:C]
    k_ref[0] = qk_t[C:]
    v_ref[0] = qkv[:, 2 * C:]


def _ln_mlp_res_kernel(x_ref, g_ref, b_ref, w1_ref, b1_ref, w2_ref, b2_ref, o_ref):
    # Fused: LayerNorm2 + MLP (fc1 -> GELU -> fc2) + residual add.
    x = x_ref[...]                                                      # (tile, C) f32
    y = _layernorm(x, g_ref[...], b_ref[...])
    h = jnp.dot(y.astype(jnp.bfloat16), w1_ref[...],
                preferred_element_type=jnp.float32) + b1_ref[...]       # (tile, Hid) f32
    h = _gelu_tanh(h)                                                   # f32 (v5e-safe)
    m = jnp.dot(h.astype(jnp.bfloat16), w2_ref[...],
                preferred_element_type=jnp.float32) + b2_ref[...]       # (tile, C) f32
    o_ref[...] = (x + m).astype(o_ref.dtype)


def _fourier_attn_kernel(r_ref, x_ref, q_ref, k_ref, v_ref, wp_ref, bp_ref, o_ref,
                         m_sc, s_sc, acc_sc, *, num_heads, head_chunk, m_real):
    # One (batch, query-tile) pair, iterated over M tiles (innermost "arbitrary" axis)
    # with flash-style running accumulators in VMEM scratch.
    m_idx = pl.program_id(2)

    @pl.when(m_idx == 0)
    def _():
        # 1e-9 floor keeps (1/m)^4 <= 1e36 (finite in f32); a row of all-tiny |a| then
        # normalizes to ~0, matching the reference a^4/(sum a^4 + 1e-6) behavior.
        m_sc[...] = jnp.full_like(m_sc, 1e-9)
        s_sc[...] = jnp.zeros_like(s_sc)
        acc_sc[...] = jnp.zeros_like(acc_sc)

    R = r_ref[0]
    qT = q_ref[0]                                   # (C, Nt)  channel-major
    kT = k_ref[0]                                   # (C, Mt)  channel-major (M tile)
    v = v_ref[0]                                    # (Mt, C)
    C, Nt = qT.shape
    Mt = kT.shape[-1]
    H = num_heads
    hd = C // H

    # Angle-sum factorization: sin(R*(q-k)) = sin(Rq)cos(Rk) - cos(Rq)sin(Rk)
    # -> 2*(Nt+Mt)*C transcendentals per tile instead of Nt*Mt*C on the EUP.
    sq = jnp.sin(R * qT); cq = jnp.cos(R * qT)      # (C, Nt)
    sk = jnp.sin(R * kT); ck = jnp.cos(R * kT)      # (C, Mt)

    # Key-padding mask for this M tile (M padded to a multiple of 128 in the wrapper).
    col = jax.lax.broadcasted_iota(jnp.int32, (1, 1, Mt), 2) + m_idx * Mt
    valid = col < m_real                            # (1, 1, Mt)

    # Per-head sinc products, processed `head_chunk` heads at a time so the live
    # (chunk*hd, Nt, Mt) slabs stay within the VMEM/vreg budget.
    a_parts = []
    for h0 in range(0, H, head_chunk):
        c0 = h0 * hd
        c1 = min(C, (h0 + head_chunk) * hd)
        diff = qT[c0:c1, :, None] - kT[c0:c1, None, :]                  # (cc, Nt, Mt)
        srd = (sq[c0:c1, :, None] * ck[c0:c1, None, :]
               - cq[c0:c1, :, None] * sk[c0:c1, None, :])               # sin(R*diff)
        small = jnp.abs(R * diff) <= 1e-3            # R-scaled zero-diff guard
        num = jnp.where(small, R, srd)               # sin(Rz)/z -> R as R*z -> 0
        den = jnp.where(small, 1.0, diff)
        hc = (c1 - c0) // hd
        num_p = _prod_axis1(num.reshape(hc, hd, Nt, Mt))                # (hc, Nt, Mt)
        den_p = _prod_axis1(den.reshape(hc, hd, Nt, Mt))
        a_parts.append(num_p / den_p)                # exact divide: feeds a**4
    a = a_parts[0] if len(a_parts) == 1 else jnp.concatenate(a_parts, axis=0)
    a = jnp.where(valid, a, 0.0)                     # zero padded key columns
    # TODO(synk): for head_dim >> 16 fold the products / a**4 in log-domain to avoid
    # f32 under/overflow of the channel products; fine for head_dim <= 16 here.

    # Online a**4 normalization (running max rescale so the 4th power cannot underflow).
    m_old = m_sc[...]                                                   # (H, Nt, 1)
    m_new = jnp.maximum(m_old, jnp.max(jnp.abs(a), axis=-1, keepdims=True))
    r_ = m_old / m_new
    alpha = (r_ * r_) * (r_ * r_)                    # (m_old/m_new)**4 rescale
    an = a * (1.0 / m_new)
    an2 = an * an
    an4 = an2 * an2                                  # (H, Nt, Mt), <= 1 per row
    s_sc[...] = alpha * s_sc[...] + jnp.sum(an4, axis=-1, keepdims=True)
    m_sc[...] = m_new

    # (unnormalized attn) @ v, assembled channel-major in registers: per-head MXU dots
    # + lane concat -- no hd-wide masked scratch stores.  bf16 casts hoisted out of loop.
    an4_bf = an4.astype(jnp.bfloat16)
    v_bf = v.astype(jnp.bfloat16)
    pv_parts = []
    al_parts = []
    for h in range(H):
        pv_parts.append(jnp.dot(an4_bf[h], v_bf[:, h * hd:(h + 1) * hd],
                                preferred_element_type=jnp.float32))    # (Nt, hd)
        al_parts.append(jnp.broadcast_to(alpha[h], (Nt, hd)))
    pv_cm = jnp.concatenate(pv_parts, axis=-1)       # (Nt, C)
    alpha_cm = jnp.concatenate(al_parts, axis=-1)    # (Nt, C)
    acc_sc[...] = alpha_cm * acc_sc[...] + pv_cm

    # Finalize: normalize, output projection, residual add (only on the last M tile).
    @pl.when(m_idx == pl.num_programs(2) - 1)
    def _():
        inv_m = 1.0 / m_sc[...]                       # <= 1e9  (floor above)
        rm4 = (inv_m * inv_m) * (inv_m * inv_m)       # <= 1e36, finite in f32
        inv_den = pl.reciprocal(s_sc[...] + 1e-6 * rm4, approx=True)    # EUP (free slot)
        den_parts = [jnp.broadcast_to(inv_den[h], (Nt, hd)) for h in range(H)]
        inv_cm = jnp.concatenate(den_parts, axis=-1)                    # (Nt, C)
        attn_out = acc_sc[...] * inv_cm                                 # (Nt, C)
        proj = jnp.dot(attn_out.astype(jnp.bfloat16), wp_ref[...],
                       preferred_element_type=jnp.float32) + bp_ref[...]
        o_ref[0] = (x_ref[0] + proj).astype(o_ref.dtype)


# ------------------------------ tiling helpers --------------------------------

def _seq_tiling(N):
    """Query-axis tile for K2 (and padded sequence length).

    The channel-major q block (1, C, N_TILE) requires N_TILE to be a multiple of 128 or
    the full (padded) sequence: use 128-wide tiles for N >= 256 (>= 2 query tiles per
    batch element -> second parallel grid axis for v7x megacore), otherwise one full tile.
    """
    if N >= 256:
        Np = -(-N // 128) * 128
        return 128, Np
    Np = -(-N // 8) * 8
    return Np, Np


def _k1_seq_tile(Np, C):
    """Sequence tile for K1 (must be a multiple of 128 or the full padded sequence,
    because q/k are emitted channel-major); sized against the VMEM budget."""
    if Np < 256:
        return Np
    w_bytes = 2 * C * 3 * C + 16 * 3 * C            # resident bf16 qkv weights + bias
    cap = max(128, (_K13_VMEM_BUDGET - w_bytes) // (32 * C))
    for t in (512, 384, 256, 128):
        if Np % t == 0 and t <= cap:
            return t
    return 128


def _k3_row_tile(rows, C, Hid):
    """Row tile for K3: as large as the VMEM budget allows (HBM-bound kernel -> bigger
    tiles amortize per-grid-step overhead), multiple of 8, >= 2 grid steps when the row
    count permits (megacore)."""
    w_bytes = 2 * 2 * C * Hid                       # resident bf16 fc1 + fc2
    per_row = 16 * C + 4 * Hid                      # double-buffered in/out f32 + hidden
    cap = max(8, min(1024, ((_K13_VMEM_BUDGET - w_bytes) // max(per_row, 1)) // 8 * 8))
    if rows <= 8:
        tile = -(-rows // 8) * 8
    elif rows < 2 * cap:
        tile = max(8, (-(-((rows + 1) // 2) // 8)) * 8)
    else:
        tile = cap
    rows_p = -(-rows // tile) * tile
    return tile, rows_p


def _head_chunk(H, hd, Nt, Mt):
    """Heads processed per inner chunk in K2 so ~5 live (chunk*hd, Nt, Mt) f32 slabs fit
    the per-chunk slab budget."""
    slab = 5 * hd * Nt * Mt * 4
    return max(1, min(H, _K2_SLAB_BUDGET // max(slab, 1)))


def _pad_axis(x, target, axis):
    pad = target - x.shape[axis]
    if pad == 0:
        return x
    widths = [(0, 0)] * x.ndim
    widths[axis] = (0, pad)
    return jnp.pad(x, widths)


def _pad_rows(x2d, padded_rows):
    r = x2d.shape[0]
    if padded_rows == r:
        return x2d
    return jnp.concatenate(
        [x2d, jnp.zeros((padded_rows - r, x2d.shape[1]), x2d.dtype)], axis=0)


# ------------------------------- pallas wrappers ------------------------------

def ln_qkv(x, gamma, beta, w_qkv, b_qkv):
    """K1: LayerNorm1 + qkv.  Returns q, k channel-major (B, C, Np) and v (B, Np, C)."""
    B, Np, C = x.shape
    nt1 = _k1_seq_tile(Np, C)
    row_spec = pl.BlockSpec((1, nt1, C), lambda b, i: (b, i, 0))
    cm_spec = pl.BlockSpec((1, C, nt1), lambda b, i: (b, 0, i))
    q, k, v = pl.pallas_call(
        _ln_qkv_kernel,
        out_shape=(jax.ShapeDtypeStruct((B, C, Np), jnp.float32),
                   jax.ShapeDtypeStruct((B, C, Np), jnp.float32),
                   jax.ShapeDtypeStruct((B, Np, C), jnp.float32)),
        grid=(B, Np // nt1),
        in_specs=[row_spec,
                  pl.BlockSpec((1, C), lambda b, i: (0, 0)),
                  pl.BlockSpec((1, C), lambda b, i: (0, 0)),
                  pl.BlockSpec((C, 3 * C), lambda b, i: (0, 0)),
                  pl.BlockSpec((1, 3 * C), lambda b, i: (0, 0))],
        out_specs=(cm_spec, cm_spec, row_spec),
        compiler_params=pltpu.CompilerParams(
            dimension_semantics=("parallel", "parallel"),
            vmem_limit_bytes=_VMEM_LIMIT),
    )(x, gamma.reshape(1, C), beta.reshape(1, C),
      w_qkv.astype(jnp.bfloat16), b_qkv.reshape(1, 3 * C))
    return q, k, v


def ln_mlp_res(x2d, gamma, beta, w1, b1, w2, b2):
    """K3: LayerNorm2 + MLP + residual over flattened (rows, C)."""
    R, C = x2d.shape
    Hid = w1.shape[1]
    tile, Rp = _k3_row_tile(R, C, Hid)
    xp = _pad_rows(x2d, Rp)
    out = pl.pallas_call(
        _ln_mlp_res_kernel,
        out_shape=jax.ShapeDtypeStruct((Rp, C), jnp.float32),
        grid=(Rp // tile,),
        in_specs=[pl.BlockSpec((tile, C), lambda i: (i, 0)),
                  pl.BlockSpec((1, C), lambda i: (0, 0)),
                  pl.BlockSpec((1, C), lambda i: (0, 0)),
                  pl.BlockSpec((C, Hid), lambda i: (0, 0)),
                  pl.BlockSpec((1, Hid), lambda i: (0, 0)),
                  pl.BlockSpec((Hid, C), lambda i: (0, 0)),
                  pl.BlockSpec((1, C), lambda i: (0, 0))],
        out_specs=pl.BlockSpec((tile, C), lambda i: (i, 0)),
        compiler_params=pltpu.CompilerParams(
            dimension_semantics=("parallel",), vmem_limit_bytes=_VMEM_LIMIT),
    )(xp, gamma.reshape(1, C), beta.reshape(1, C),
      w1.astype(jnp.bfloat16), b1.reshape(1, Hid),
      w2.astype(jnp.bfloat16), b2.reshape(1, C))
    return out[:R]


def fourier_attn_proj_residual(x, q_cm, k_cm, v_sel, paramR, w_proj, b_proj,
                               num_heads, *, n_tile, m_real):
    """K2: flash-style Fourier attention over M tiles + out-projection + residual."""
    B, Np, C = x.shape
    Mp = k_cm.shape[2]
    M_TILE = 128                                    # Mp padded to multiple of 128
    hd = C // num_heads
    hc = _head_chunk(num_heads, hd, n_tile, M_TILE)
    kern = functools.partial(_fourier_attn_kernel, num_heads=num_heads,
                             head_chunk=hc, m_real=m_real)
    return pl.pallas_call(
        kern,
        out_shape=jax.ShapeDtypeStruct((B, Np, C), jnp.float32),
        grid=(B, Np // n_tile, Mp // M_TILE),
        in_specs=[pl.BlockSpec(memory_space=pltpu.MemorySpace.SMEM),           # paramR
                  pl.BlockSpec((1, n_tile, C), lambda b, i, m: (b, i, 0)),     # residual x
                  pl.BlockSpec((1, C, n_tile), lambda b, i, m: (b, 0, i)),     # q (chan-major)
                  pl.BlockSpec((1, C, M_TILE), lambda b, i, m: (b, 0, m)),     # k tile
                  pl.BlockSpec((1, M_TILE, C), lambda b, i, m: (b, m, 0)),     # v tile
                  pl.BlockSpec((C, C), lambda b, i, m: (0, 0)),                # w_proj bf16
                  pl.BlockSpec((1, C), lambda b, i, m: (0, 0))],               # b_proj
        out_specs=pl.BlockSpec((1, n_tile, C), lambda b, i, m: (b, i, 0)),
        scratch_shapes=[pltpu.VMEM((num_heads, n_tile, 1), jnp.float32),       # running max|a|
                        pltpu.VMEM((num_heads, n_tile, 1), jnp.float32),       # running sum a^4
                        pltpu.VMEM((n_tile, C), jnp.float32)],                 # running attn@v
        compiler_params=pltpu.CompilerParams(
            dimension_semantics=("parallel", "parallel", "arbitrary"),
            vmem_limit_bytes=_VMEM_LIMIT),
    )(paramR, x, q_cm, k_cm, v_sel, w_proj.astype(jnp.bfloat16), b_proj.reshape(1, C))


# ------------------------------- module forward -------------------------------

def mom_fourier_block_forward(x, params, indices):
    B, N, C = x.shape
    H = params["num_heads"]
    hd = C // H
    scale = hd ** (-0.5)
    K = len(indices)
    M = int(indices[0].shape[0])

    nt, Np = _seq_tiling(N)
    x_p = _pad_axis(x, Np, axis=1)                                     # (B, Np, C)

    # ---- x = x + proj(fourier_attn(qkv(norm1(x)))) ----
    q_cm, k_cm, v = ln_qkv(x_p, params["norm1_g"], params["norm1_b"],
                           params["w_qkv"], params["b_qkv"])           # (B,C,Np)x2,(B,Np,C)

    # Block-selection heuristic (mirrors the torch.no_grad() host-side likelihood scan):
    # likelihood_j = -scale * (M*||q||^2 + N*||k_j||^2 - 2 <sum_n q, sum_m k_j>).
    # Computed with masked reductions (no K-way k/v materialization); only the winning
    # block is gathered afterwards.
    q_r = q_cm[:, :, :N]
    k_r = k_cm[:, :, :N]
    masks_np = np.zeros((K, N), np.float32)
    for j, idx in enumerate(indices):
        masks_np[j, idx] = 1.0
    masks = jnp.asarray(masks_np)                                       # (K, N)
    q_sq = jnp.sum(q_r * q_r)
    k_pos_sq = jnp.sum(k_r * k_r, axis=(0, 1))                          # (N,)
    k_sq = masks @ k_pos_sq                                             # (K,)
    q_sum = jnp.sum(q_r, axis=2)                                        # (B, C)
    k_sum = jnp.einsum("kn,bcn->kbc", masks, k_r)                       # (K, B, C)
    cross = jnp.einsum("bc,kbc->k", q_sum, k_sum)                       # (K,)
    likelihood = -scale * (M * q_sq + N * k_sq - 2.0 * cross)
    b_idx = jnp.argsort(likelihood)[K // 2]

    idx_arr = jnp.asarray(np.stack(indices).astype(np.int32))           # (K, M)
    win = idx_arr[b_idx]                                                # (M,)
    k_sel = jnp.take(k_r, win, axis=2)                                  # (B, C, M)
    v_sel = jnp.take(v[:, :N, :], win, axis=1)                          # (B, M, C)

    # Pad the selected-key axis to a lane-dense multiple of 128; pads masked in-kernel.
    Mp = -(-M // 128) * 128
    k_sel = jnp.pad(k_sel, ((0, 0), (0, 0), (0, Mp - M)))
    v_sel = jnp.pad(v_sel, ((0, 0), (0, Mp - M), (0, 0)))

    x1 = fourier_attn_proj_residual(x_p, q_cm, k_sel, v_sel, params["paramR"],
                                    params["w_proj"], params["b_proj"], H,
                                    n_tile=nt, m_real=M)                # (B, Np, C)

    # ---- x = x + mlp(norm2(x)) ----
    x2 = ln_mlp_res(x1.reshape(B * Np, C), params["norm2_g"], params["norm2_b"],
                    params["w_fc1"], params["b_fc1"], params["w_fc2"], params["b_fc2"])
    return x2.reshape(B, Np, C)[:, :N, :]


# ----------------------------------- main --------------------------------------

if __name__ == "__main__":
    B, N, C, H = 2, 16, 32, 4          # dim=32, num_heads=4 -> head_dim=8
    mlp_ratio = 4.0
    num_blocks = 3                     # K
    outlier_fraction = 0.05
    Hid = int(C * mlp_ratio)

    key = jax.random.PRNGKey(0)
    ks = jax.random.split(key, 10)
    params = {
        "num_heads": H,
        "norm1_g": jnp.ones((C,), jnp.float32),
        "norm1_b": jnp.zeros((C,), jnp.float32),
        "norm2_g": jnp.ones((C,), jnp.float32),
        "norm2_b": jnp.zeros((C,), jnp.float32),
        "w_qkv": 0.05 * jax.random.normal(ks[0], (C, 3 * C), jnp.float32),
        "b_qkv": jnp.zeros((3 * C,), jnp.float32),          # qkv_bias=False
        "w_proj": 0.05 * jax.random.normal(ks[1], (C, C), jnp.float32),
        "b_proj": 0.02 * jax.random.normal(ks[2], (C,), jnp.float32),
        "w_fc1": 0.05 * jax.random.normal(ks[3], (C, Hid), jnp.float32),
        "b_fc1": 0.02 * jax.random.normal(ks[4], (Hid,), jnp.float32),
        "w_fc2": 0.05 * jax.random.normal(ks[5], (Hid, C), jnp.float32),
        "b_fc2": 0.02 * jax.random.normal(ks[6], (C,), jnp.float32),
        "paramR": jnp.ones((1,), jnp.float32),              # nn.Parameter(1.0 * ones(1))
    }

    # divide_batch(): K random index subsets of size int(N*(1-outlier)), uniform without
    # replacement, sorted — made deterministic with a fixed numpy seed.
    rng = np.random.default_rng(0)
    M_sel = int(N * (1 - outlier_fraction))
    indices = [np.sort(rng.choice(np.arange(N), size=M_sel, replace=False,
                                  p=np.ones(N) / N)) for _ in range(num_blocks)]

    x = jax.random.normal(ks[7], (B, N, C), jnp.float32)
    out = mom_fourier_block_forward(x, params, indices)
    out = jax.block_until_ready(out)

    assert out.shape == (B, N, C)
    assert bool(jnp.all(jnp.isfinite(out)))
    print("KERNEL_OK")
</pallas_src>

<mosaic_0001>
module attributes {stable_mosaic.version = 11 : i64} {
  func.func @_ln_qkv_kernel(%arg0: i32, %arg1: i32, %arg2: memref<1x16x32xf32, #tpu.memory_space<vmem>>, %arg3: memref<1x32xf32, #tpu.memory_space<vmem>>, %arg4: memref<1x32xf32, #tpu.memory_space<vmem>>, %arg5: memref<32x96xbf16, #tpu.memory_space<vmem>>, %arg6: memref<1x96xf32, #tpu.memory_space<vmem>>, %arg7: memref<1x32x16xf32, #tpu.memory_space<vmem>>, %arg8: memref<1x32x16xf32, #tpu.memory_space<vmem>>, %arg9: memref<1x16x32xf32, #tpu.memory_space<vmem>>) attributes {dimension_semantics = [#tpu.dimension_semantics<parallel>, #tpu.dimension_semantics<parallel>], iteration_bounds = array<i64: 2, 1>, scalar_prefetch = 0 : i64, scratch_operands = 0 : i64, tpu.core_type = #tpu.core_type<tc>, window_params = [{transform_indices = @transform_0, window_bounds = array<i64: 1, 16, 32>}, {pipeline_mode = #tpu.pipeline_mode<synchronous>, transform_indices = @transform_1, window_bounds = array<i64: 1, 32>}, {pipeline_mode = #tpu.pipeline_mode<synchronous>, transform_indices = @transform_2, window_bounds = array<i64: 1, 32>}, {pipeline_mode = #tpu.pipeline_mode<synchronous>, transform_indices = @transform_3, window_bounds = array<i64: 32, 96>}, {pipeline_mode = #tpu.pipeline_mode<synchronous>, transform_indices = @transform_4, window_bounds = array<i64: 1, 96>}, {transform_indices = @transform_5, window_bounds = array<i64: 1, 32, 16>}, {transform_indices = @transform_6, window_bounds = array<i64: 1, 32, 16>}, {transform_indices = @transform_7, window_bounds = array<i64: 1, 16, 32>}]} {
    %c0 = arith.constant 0 : index
    %c0_0 = arith.constant 0 : index
    %c0_1 = arith.constant 0 : index
    %0 = vector.load %arg2[%c0, %c0_0, %c0_1] : memref<1x16x32xf32, #tpu.memory_space<vmem>>, vector<1x16x32xf32>
    %1 = vector.shape_cast %0 : vector<1x16x32xf32> to vector<16x32xf32>
    %c0_2 = arith.constant 0 : index
    %c0_3 = arith.constant 0 : index
    %2 = vector.load %arg3[%c0_2, %c0_3] : memref<1x32xf32, #tpu.memory_space<vmem>>, vector<1x32xf32>
    %c0_4 = arith.constant 0 : index
    %c0_5 = arith.constant 0 : index
    %3 = vector.load %arg4[%c0_4, %c0_5] : memref<1x32xf32, #tpu.memory_space<vmem>>, vector<1x32xf32>
    %cst = arith.constant dense<0.000000e+00> : vector<16xf32>
    %4 = vector.multi_reduction <add>, %1, %cst [1] : vector<16x32xf32> to vector<16xf32>
    %5 = vector.shape_cast %4 : vector<16xf32> to vector<16x1xf32>
    %cst_6 = arith.constant 3.200000e+01 : f32
    %6 = vector.broadcast %cst_6 : f32 to vector<16x1xf32>
    %7 = arith.divf %5, %6 : vector<16x1xf32>
    %8 = vector.broadcast %7 : vector<16x1xf32> to vector<16x32xf32>
    %9 = arith.subf %1, %8 : vector<16x32xf32>
    %10 = arith.mulf %9, %9 : vector<16x32xf32>
    %cst_7 = arith.constant dense<0.000000e+00> : vector<16xf32>
    %11 = vector.multi_reduction <add>, %10, %cst_7 [1] : vector<16x32xf32> to vector<16xf32>
    %12 = vector.shape_cast %11 : vector<16xf32> to vector<16x1xf32>
    %cst_8 = arith.constant 3.200000e+01 : f32
    %13 = vector.broadcast %cst_8 : f32 to vector<16x1xf32>
    %14 = arith.divf %12, %13 : vector<16x1xf32>
    %cst_9 = arith.constant 9.99999974E-6 : f32
    %15 = vector.broadcast %cst_9 : f32 to vector<16x1xf32>
    %16 = arith.addf %14, %15 : vector<16x1xf32>
    %17 = math.rsqrt %16 : vector<16x1xf32>
    %18 = vector.broadcast %17 : vector<16x1xf32> to vector<16x32xf32>
    %19 = arith.mulf %9, %18 : vector<16x32xf32>
    %20 = vector.broadcast %2 : vector<1x32xf32> to vector<16x32xf32>
    %21 = arith.mulf %19, %20 : vector<16x32xf32>
    %22 = vector.broadcast %3 : vector<1x32xf32> to vector<16x32xf32>
    %23 = arith.addf %21, %22 : vector<16x32xf32>
    %24 = arith.truncf %23 : vector<16x32xf32> to vector<16x32xbf16>
    %c0_10 = arith.constant 0 : index
    %c0_11 = arith.constant 0 : index
    %25 = vector.load %arg5[%c0_10, %c0_11] : memref<32x96xbf16, #tpu.memory_space<vmem>>, vector<32x96xbf16>
    %cst_12 = arith.constant dense<0.000000e+00> : vector<16x96xf32>
    %26 = tpu.matmul %24, %25, %cst_12 {dimension_numbers = #tpu.dot_dimension_numbers<[1], [0], [0], [1], [0, 0, 1, 1], [], []>} : vector<16x32xbf16>, vector<32x96xbf16>, vector<16x96xf32> -> vector<16x96xf32>
    %c0_13 = arith.constant 0 : index
    %c0_14 = arith.constant 0 : index
    %27 = vector.load %arg6[%c0_13, %c0_14] : memref<1x96xf32, #tpu.memory_space<vmem>>, vector<1x96xf32>
    %28 = vector.broadcast %27 : vector<1x96xf32> to vector<16x96xf32>
    %29 = arith.addf %26, %28 : vector<16x96xf32>
    %30 = vector.extract_strided_slice %29 {offsets = [0, 0], sizes = [16, 64], strides = [1, 1]} : vector<16x96xf32> to vector<16x64xf32>
    %31 = tpu.transpose %30, [1, 0] : vector<16x64xf32> -> vector<64x16xf32>
    %32 = vector.extract_strided_slice %31 {offsets = [0, 0], sizes = [32, 16], strides = [1, 1]} : vector<64x16xf32> to vector<32x16xf32>
    %c0_15 = arith.constant 0 : index
    %c0_16 = arith.constant 0 : index
    %c0_17 = arith.constant 0 : index
    %33 = vector.load %arg7[%c0_15, %c0_16, %c0_17] : memref<1x32x16xf32, #tpu.memory_space<vmem>>, vector<1x32x16xf32>
    %34 = vector.shape_cast %33 : vector<1x32x16xf32> to vector<32x16xf32>
    %35 = vector.shape_cast %32 : vector<32x16xf32> to vector<1x32x16xf32>
    tpu.vector_store %arg7[%c0_15, %c0_16, %c0_17], %35 {strides = array<i32>} : memref<1x32x16xf32, #tpu.memory_space<vmem>>, vector<1x32x16xf32>,
    %36 = vector.extract_strided_slice %31 {offsets = [32, 0], sizes = [32, 16], strides = [1, 1]} : vector<64x16xf32> to vector<32x16xf32>
    %c0_18 = arith.constant 0 : index
    %c0_19 = arith.constant 0 : index
    %c0_20 = arith.constant 0 : index
    %37 = vector.load %arg8[%c0_18, %c0_19, %c0_20] : memref<1x32x16xf32, #tpu.memory_space<vmem>>, vector<1x32x16xf32>
    %38 = vector.shape_cast %37 : vector<1x32x16xf32> to vector<32x16xf32>
    %39 = vector.shape_cast %36 : vector<32x16xf32> to vector<1x32x16xf32>
    tpu.vector_store %arg8[%c0_18, %c0_19, %c0_20], %39 {strides = array<i32>} : memref<1x32x16xf32, #tpu.memory_space<vmem>>, vector<1x32x16xf32>,
    %40 = vector.extract_strided_slice %29 {offsets = [0, 64], sizes = [16, 32], strides = [1, 1]} : vector<16x96xf32> to vector<16x32xf32>
    %c0_21 = arith.constant 0 : index
    %c0_22 = arith.constant 0 : index
    %c0_23 = arith.constant 0 : index
    %41 = vector.load %arg9[%c0_21, %c0_22, %c0_23] : memref<1x16x32xf32, #tpu.memory_space<vmem>>, vector<1x16x32xf32>
    %42 = vector.shape_cast %41 : vector<1x16x32xf32> to vector<16x32xf32>
    %43 = vector.shape_cast %40 : vector<16x32xf32> to vector<1x16x32xf32>
    tpu.vector_store %arg9[%c0_21, %c0_22, %c0_23], %43 {strides = array<i32>} : memref<1x16x32xf32, #tpu.memory_space<vmem>>, vector<1x16x32xf32>,
    return
  }
  func.func @transform_0(%arg0: i32, %arg1: i32) -> (i32, i32, i32) {
    %c0_i32 = arith.constant 0 : i32
    %c0_i32_0 = arith.constant 0 : i32
    return %arg0, %arg1, %c0_i32 : i32, i32, i32
  }
  func.func @transform_1(%arg0: i32, %arg1: i32) -> (i32, i32) {
    %c0_i32 = arith.constant 0 : i32
    %c0_i32_0 = arith.constant 0 : i32
    %c0_i32_1 = arith.constant 0 : i32
    return %c0_i32, %c0_i32_0 : i32, i32
  }
  func.func @transform_2(%arg0: i32, %arg1: i32) -> (i32, i32) {
    %c0_i32 = arith.constant 0 : i32
    %c0_i32_0 = arith.constant 0 : i32
    %c0_i32_1 = arith.constant 0 : i32
    return %c0_i32, %c0_i32_0 : i32, i32
  }
  func.func @transform_3(%arg0: i32, %arg1: i32) -> (i32, i32) {
    %c0_i32 = arith.constant 0 : i32
    %c0_i32_0 = arith.constant 0 : i32
    %c0_i32_1 = arith.constant 0 : i32
    return %c0_i32, %c0_i32_0 : i32, i32
  }
  func.func @transform_4(%arg0: i32, %arg1: i32) -> (i32, i32) {
    %c0_i32 = arith.constant 0 : i32
    %c0_i32_0 = arith.constant 0 : i32
    %c0_i32_1 = arith.constant 0 : i32
    return %c0_i32, %c0_i32_0 : i32, i32
  }
  func.func @transform_5(%arg0: i32, %arg1: i32) -> (i32, i32, i32) {
    %c0_i32 = arith.constant 0 : i32
    %c0_i32_0 = arith.constant 0 : i32
    return %arg0, %c0_i32, %arg1 : i32, i32, i32
  }
  func.func @transform_6(%arg0: i32, %arg1: i32) -> (i32, i32, i32) {
    %c0_i32 = arith.constant 0 : i32
    %c0_i32_0 = arith.constant 0 : i32
    return %arg0, %c0_i32, %arg1 : i32, i32, i32
  }
  func.func @transform_7(%arg0: i32, %arg1: i32) -> (i32, i32, i32) {
    %c0_i32 = arith.constant 0 : i32
    %c0_i32_0 = arith.constant 0 : i32
    return %arg0, %arg1, %c0_i32 : i32, i32, i32
  }
}

</mosaic_0001>

<llo_original>
// kernel: tpu_custom_call.1
$region0: #{tpu_custom_call.1}
  #allocation0 [shape = 'u32[]', space=smem, size = 0x4, offset = 0x4, fixed_abs, tag = 'smem constant byte address 0x4 - core index']
  #allocation1 [shape = 'u32[144,128]{1,0:T(1,128)}', space=vmem, size = 0x12000, scoped, tag = 'internal scratch']
  %s0 = inlined_call_operand.hbm [shape: f32[2,16,32], index: 0, kind: input, shape index: {}]
  %s1 = inlined_call_operand.vmem [shape: f32[1,32], index: 1, kind: input, shape index: {}]
  %s2 = inlined_call_operand.vmem [shape: f32[1,32], index: 2, kind: input, shape index: {}]
  %s3 = inlined_call_operand.hbm [shape: bf16[32,96], index: 3, kind: input, shape index: {}]
  %s4 = inlined_call_operand.vmem [shape: f32[1,96], index: 4, kind: input, shape index: {}]
  %s5 = inlined_call_operand.vmem [shape: f32[2,32,16], index: 5, kind: output, shape index: {0}]
  %s6 = inlined_call_operand.vmem [shape: f32[2,32,16], index: 6, kind: output, shape index: {1}]
  %s7 = inlined_call_operand.hbm [shape: f32[2,16,32], index: 7, kind: output, shape index: {2}]
  %8 = xla_tuple %s5, %s6, %s7
  %s9 = sld [smem:[#allocation0]]
  $region77: #{tpu_custom_call.1} parent=0
    _
  %s11 = ssub.s32 1, %s9
  %s12 = scalar_select 0, %s11, %s9
  $region1: #{tpu_custom_call.1} parent=0
    #allocation2 [shape = 'u8[16384]{0}', space=vmem, size = 0x4000, scoped, tag = 'input window, operand 0']
    #allocation3 [shape = 's32[2]{0}', space=sflag, size = 0x8, scoped, tag = 'scoped memory for tpu_custom_call.1']
    #allocation4 [shape = 's32[2]{0}', space=sflag, size = 0x8, scoped, tag = 'scoped memory for tpu_custom_call.1']
    #allocation5 [shape = 'u8[8192]{0}', space=vmem, size = 0x2000, scoped, tag = 'input window, operand 3, single buffered']
    #allocation6 [shape = 's32[1]{0}', space=sflag, size = 0x4, scoped, tag = 'scoped memory for tpu_custom_call.1']
    #allocation7 [shape = 'u8[16384]{0}', space=vmem, size = 0x4000, scoped, tag = 'output window, operand 2']
    %13 = vsyncpa [#allocation3], 0
    %s14 = scalar_lea.sflag [#allocation3], 1
    %15 = vsyncpa %s14, 0
    %16 = vsyncpa [#allocation6], 0
    %17 = vsyncpa [#allocation4], 0
    %s18 = scalar_lea.sflag [#allocation4], 1
    %19 = vsyncpa %s18, 0
    loop: start=0, step=1, limit=4
    $region2: #{tpu_custom_call.1} parent=1 // loop_pre_header
      _
    $region3: #{tpu_custom_call.1} parent=1 // loop_header
      %s21 = sphi 0, %s25
      %p22 = scmp.ge.s32.totalorder %s21, 4
      %s28 = sphi 0, %s40
      %s29 = sphi 0, %s36
      %s30 = sphi 0, %s28
      %s31 = sphi 0, %s29
      %s32 = sphi 0, %s30
      %s33 = sphi 0, %s31
      %s45 = sphi 0, %s47
      %s48 = sphi 0, %s45
      %s49 = sphi 0, %s48
      %s65 = sphi 0, %s49
      %s69 = sphi 0, %s69
      %s71 = sphi 0, %s69
      %s72 = sphi 0, %s71
      %s86 = sphi 0, %s72
      %s90 = sphi 0, %s90
      %s92 = sphi 0, %s90
      %s93 = sphi 0, %s92
      %s107 = sphi 0, %s93
      %s111 = sphi 0, %s111
      %s113 = sphi 0, %s111
      %s114 = sphi 0, %s113
      %s128 = sphi 0, %s114
      %s132 = sphi 0, %s132
      %s134 = sphi 0, %s132
      %s135 = sphi 0, %s134
      %s149 = sphi 0, %s135
      %s157 = sphi 0, %s159
      %s160 = sphi 0, %s157
      %s161 = sphi 0, %s160
      %s177 = sphi 0, %s161
      %s185 = sphi 0, %s187
      %s188 = sphi 0, %s185
      %s189 = sphi 0, %s188
      %s205 = sphi 0, %s189
      %s213 = sphi 0, %s215
      %s216 = sphi 0, %s213
      %s217 = sphi 0, %s216
      %s233 = sphi 0, %s217
    $region4: #{tpu_custom_call.1} parent=1 // loop_header_branch
      %24 = sbr.rel (%p22) target = $region8
    $region5: #{tpu_custom_call.1} parent=1 // loop_body
      %s26 = ssub.s32 %s21, 1
      %s27 = ssub.s32 %s21, 2
      %s34 = sadd.s32 1, %s29
      %p35 = scmp.ge.s32.totalorder %s34, 1
      %s36 = scalar_select %p35, 0, %s34
      %s37 = sadd.s32 1, %s28
      %s38 = scalar_select %p35, %s37, %s28
      %p39 = scmp.ge.s32.totalorder %s38, 2
      %s40 = scalar_select %p39, 0, %s38
      %s41 = ssub.s32 %s28, %s40
      %s42 = ssub.s32 %s29, %s36
      %s43 = sor.u32 %s41, %s42
      %p44 = scmp.eq.s32.totalorder %s43, 0
      %s46 = sadd.s32 %s45, 1
      %s47 = scalar_select %p44, %s45, %s46
      %p50 = pneg %p44
      %p51 = scmp.eq.s32.totalorder %s21, 1
      %p52 = por %p50, %p51
      %p53 = scmp.ne.s32.totalorder %s45, %s48
      %p54 = scmp.eq.s32.totalorder %s21, 0
      %p55 = por %p53, %p54
      %p56 = scmp.ne.s32.totalorder %s45, %s48
      %p57 = scmp.eq.s32.totalorder %s26, 1
      %p58 = por %p56, %p57
      %p59 = scmp.ne.s32.totalorder %s48, %s49
      %p60 = scmp.eq.s32.totalorder %s26, 0
      %p61 = por %p59, %p60
      %p62 = scmp.ne.s32.totalorder %s48, %s49
      %p63 = scmp.eq.s32.totalorder %s27, 1
      %p64 = por %p62, %p63
      %p66 = scmp.ne.s32.totalorder %s49, %s65
      %p67 = scmp.eq.s32.totalorder %s27, 0
      %p68 = por %p66, %p67
      %s70 = sadd.s32 %s69, 1
      %p73 = scmp.eq.s32.totalorder %s21, 1
      %p74 = scmp.ne.s32.totalorder %s69, %s71
      %p75 = scmp.eq.s32.totalorder %s21, 0
      %p76 = por %p74, %p75
      %p77 = scmp.ne.s32.totalorder %s69, %s71
      %p78 = scmp.eq.s32.totalorder %s26, 1
      %p79 = por %p77, %p78
      %p80 = scmp.ne.s32.totalorder %s71, %s72
      %p81 = scmp.eq.s32.totalorder %s26, 0
      %p82 = por %p80, %p81
      %p83 = scmp.ne.s32.totalorder %s71, %s72
      %p84 = scmp.eq.s32.totalorder %s27, 1
      %p85 = por %p83, %p84
      %p87 = scmp.ne.s32.totalorder %s72, %s86
      %p88 = scmp.eq.s32.totalorder %s27, 0
      %p89 = por %p87, %p88
      %s91 = sadd.s32 %s90, 1
      %p94 = scmp.eq.s32.totalorder %s21, 1
      %p95 = scmp.ne.s32.totalorder %s90, %s92
      %p96 = scmp.eq.s32.totalorder %s21, 0
      %p97 = por %p95, %p96
      %p98 = scmp.ne.s32.totalorder %s90, %s92
      %p99 = scmp.eq.s32.totalorder %s26, 1
      %p100 = por %p98, %p99
      %p101 = scmp.ne.s32.totalorder %s92, %s93
      %p102 = scmp.eq.s32.totalorder %s26, 0
      %p103 = por %p101, %p102
      %p104 = scmp.ne.s32.totalorder %s92, %s93
      %p105 = scmp.eq.s32.totalorder %s27, 1
      %p106 = por %p104, %p105
      %p108 = scmp.ne.s32.totalorder %s93, %s107
      %p109 = scmp.eq.s32.totalorder %s27, 0
      %p110 = por %p108, %p109
      %s112 = sadd.s32 %s111, 1
      %p115 = scmp.eq.s32.totalorder %s21, 1
      %p116 = scmp.ne.s32.totalorder %s111, %s113
      %p117 = scmp.eq.s32.totalorder %s21, 0
      %p118 = por %p116, %p117
      %p119 = scmp.ne.s32.totalorder %s111, %s113
      %p120 = scmp.eq.s32.totalorder %s26, 1
      %p121 = por %p119, %p120
      %p122 = scmp.ne.s32.totalorder %s113, %s114
      %p123 = scmp.eq.s32.totalorder %s26, 0
      %p124 = por %p122, %p123
      %p125 = scmp.ne.s32.totalorder %s113, %s114
      %p126 = scmp.eq.s32.totalorder %s27, 1
      %p127 = por %p125, %p126
      %p129 = scmp.ne.s32.totalorder %s114, %s128
      %p130 = scmp.eq.s32.totalorder %s27, 0
      %p131 = por %p129, %p130
      %s133 = sadd.s32 %s132, 1
      %p136 = scmp.eq.s32.totalorder %s21, 1
      %p137 = scmp.ne.s32.totalorder %s132, %s134
      %p138 = scmp.eq.s32.totalorder %s21, 0
      %p139 = por %p137, %p138
      %p140 = scmp.ne.s32.totalorder %s132, %s134
      %p141 = scmp.eq.s32.totalorder %s26, 1
      %p142 = por %p140, %p141
      %p143 = scmp.ne.s32.totalorder %s134, %s135
      %p144 = scmp.eq.s32.totalorder %s26, 0
      %p145 = por %p143, %p144
      %p146 = scmp.ne.s32.totalorder %s134, %s135
      %p147 = scmp.eq.s32.totalorder %s27, 1
      %p148 = por %p146, %p147
      %p150 = scmp.ne.s32.totalorder %s135, %s149
      %p151 = scmp.eq.s32.totalorder %s27, 0
      %p152 = por %p150, %p151
      %s153 = ssub.s32 %s28, %s40
      %s154 = ssub.s32 %s29, %s36
      %s155 = sor.u32 %s153, %s154
      %p156 = scmp.eq.s32.totalorder %s155, 0
      %s158 = sadd.s32 %s157, 1
      %s159 = scalar_select %p156, %s157, %s158
      %p162 = pneg %p156
      %p163 = scmp.eq.s32.totalorder %s21, 1
      %p164 = por %p162, %p163
      %p165 = scmp.ne.s32.totalorder %s157, %s160
      %p166 = scmp.eq.s32.totalorder %s21, 0
      %p167 = por %p165, %p166
      %p168 = scmp.ne.s32.totalorder %s157, %s160
      %p169 = scmp.eq.s32.totalorder %s26, 1
      %p170 = por %p168, %p169
      %p171 = scmp.ne.s32.totalorder %s160, %s161
      %p172 = scmp.eq.s32.totalorder %s26, 0
      %p173 = por %p171, %p172
      %p174 = scmp.ne.s32.totalorder %s160, %s161
      %p175 = scmp.eq.s32.totalorder %s27, 1
      %p176 = por %p174, %p175
      %p178 = scmp.ne.s32.totalorder %s161, %s177
      %p179 = scmp.eq.s32.totalorder %s27, 0
      %p180 = por %p178, %p179
      %s181 = ssub.s32 %s28, %s40
      %s182 = ssub.s32 %s29, %s36
      %s183 = sor.u32 %s181, %s182
      %p184 = scmp.eq.s32.totalorder %s183, 0
      %s186 = sadd.s32 %s185, 1
      %s187 = scalar_select %p184, %s185, %s186
      %p190 = pneg %p184
      %p191 = scmp.eq.s32.totalorder %s21, 1
      %p192 = por %p190, %p191
      %p193 = scmp.ne.s32.totalorder %s185, %s188
      %p194 = scmp.eq.s32.totalorder %s21, 0
      %p195 = por %p193, %p194
      %p196 = scmp.ne.s32.totalorder %s185, %s188
      %p197 = scmp.eq.s32.totalorder %s26, 1
      %p198 = por %p196, %p197
      %p199 = scmp.ne.s32.totalorder %s188, %s189
      %p200 = scmp.eq.s32.totalorder %s26, 0
      %p201 = por %p199, %p200
      %p202 = scmp.ne.s32.totalorder %s188, %s189
      %p203 = scmp.eq.s32.totalorder %s27, 1
      %p204 = por %p202, %p203
      %p206 = scmp.ne.s32.totalorder %s189, %s205
      %p207 = scmp.eq.s32.totalorder %s27, 0
      %p208 = por %p206, %p207
      %s209 = ssub.s32 %s28, %s40
      %s210 = ssub.s32 %s29, %s36
      %s211 = sor.u32 %s209, %s210
      %p212 = scmp.eq.s32.totalorder %s211, 0
      %s214 = sadd.s32 %s213, 1
      %s215 = scalar_select %p212, %s213, %s214
      %p218 = pneg %p212
      %p219 = scmp.eq.s32.totalorder %s21, 1
      %p220 = por %p218, %p219
      %p221 = scmp.ne.s32.totalorder %s213, %s216
      %p222 = scmp.eq.s32.totalorder %s21, 0
      %p223 = por %p221, %p222
      %p224 = scmp.ne.s32.totalorder %s213, %s216
      %p225 = scmp.eq.s32.totalorder %s26, 1
      %p226 = por %p224, %p225
      %p227 = scmp.ne.s32.totalorder %s216, %s217
      %p228 = scmp.eq.s32.totalorder %s26, 0
      %p229 = por %p227, %p228
      %p230 = scmp.ne.s32.totalorder %s216, %s217
      %p231 = scmp.eq.s32.totalorder %s27, 1
      %p232 = por %p230, %p231
      %p234 = scmp.ne.s32.totalorder %s217, %s233
      %p235 = scmp.eq.s32.totalorder %s27, 0
      %p236 = por %p234, %p235
      %p237 = scmp.le.s32.totalorder 1, %s21
      %p238 = scmp.lt.s32.totalorder %s21, 3
      %p239 = pnand %p237, %p238
      %p240 = pneg %p239
      // Predicated region
      $region9: #{tpu_custom_call.1} parent=5 // pred_check
        _
      $region10: #{tpu_custom_call.1} parent=5 // pred_check_branch
        %242 = sbr.rel (%p239) target = $region12
      $region11: #{tpu_custom_call.1} parent=5 // pred_region
        %s243 = ssub.s32 %s21, 1
        // Predicated region
        $region13: #{tpu_custom_call.1} parent=11 // pred_check
          %p244 = pneg %p82
        $region14: #{tpu_custom_call.1} parent=11 // pred_check_branch
          %246 = sbr.rel (%p244) target = $region16
        $region15: #{tpu_custom_call.1} parent=11 // pred_region
          _
        $region16: #{tpu_custom_call.1} parent=11 // pred_fallthru
          _
        // Predicated region
        $region17: #{tpu_custom_call.1} parent=11 // pred_check
          %p247 = pneg %p103
        $region18: #{tpu_custom_call.1} parent=11 // pred_check_branch
          %249 = sbr.rel (%p247) target = $region20
        $region19: #{tpu_custom_call.1} parent=11 // pred_region
          _
        $region20: #{tpu_custom_call.1} parent=11 // pred_fallthru
          _
        // Predicated region
        $region21: #{tpu_custom_call.1} parent=11 // pred_check
          %p250 = pneg %p124
        $region22: #{tpu_custom_call.1} parent=11 // pred_check_branch
          %252 = sbr.rel (%p250) target = $region24
        $region23: #{tpu_custom_call.1} parent=11 // pred_region
          %s254 = ssub.s32 256, 256
          %255 = vsyncadd [#allocation6], %s254
          %s256 = sshll.u32 [#allocation5], 4
          %s257 = int_to_ptr.vmem [resolvable:$true] %s256
          %262 = dma.hbm_to_vmem [thread:$0]  %s3, 256, %s257, [#allocation6], 64, 64, 4
        $region24: #{tpu_custom_call.1} parent=11 // pred_fallthru
          _
        // Predicated region
        $region25: #{tpu_custom_call.1} parent=11 // pred_check
          %p263 = pneg %p145
        $region26: #{tpu_custom_call.1} parent=11 // pred_check_branch
          %265 = sbr.rel (%p263) target = $region28
        $region27: #{tpu_custom_call.1} parent=11 // pred_region
          _
        $region28: #{tpu_custom_call.1} parent=11 // pred_fallthru
          _
      $region12: #{tpu_custom_call.1} parent=5 // pred_fallthru
        _
      %p266 = scmp.lt.s32.totalorder %s21, 2
      // Predicated region
      $region29: #{tpu_custom_call.1} parent=5 // pred_check
        %p267 = pneg %p266
      $region30: #{tpu_custom_call.1} parent=5 // pred_check_branch
        %269 = sbr.rel (%p267) target = $region32
      $region31: #{tpu_custom_call.1} parent=5 // pred_region
        // Predicated region
        $region33: #{tpu_custom_call.1} parent=31 // pred_check
          %p270 = pneg %p55
        $region34: #{tpu_custom_call.1} parent=31 // pred_check_branch
          %272 = sbr.rel (%p270) target = $region36
        $region35: #{tpu_custom_call.1} parent=31 // pred_region
          %s273 = sand.u32 %s45, 1
          %s274 = scalar_lea.sflag [#allocation3], %s273
          %s275 = sand.u32 %s45, 1
          %s276 = smul.addr %s275, 16
          %s277 = scalar_lea.vmem [#allocation2], %s276
          %s278 = smul.u32 2, %s29
          %s280 = ssub.s32 256, 256
          %281 = vsyncadd %s274, %s280
          %s282 = smul.addr %s28, 2
          %s283 = sadd.s32 %s278, %s282
          %s284 = smul.addr %s283, 128
          %s285 = scalar_lea.hbm %s0, %s284
          %s286 = sshll.u32 %s277, 4
          %s287 = int_to_ptr.vmem [resolvable:$true] %s286
          %292 = dma.hbm_to_vmem [thread:$0]  %s285, 256, %s287, %s274, 128, 128, 8
        $region36: #{tpu_custom_call.1} parent=31 // pred_fallthru
          _
      $region32: #{tpu_custom_call.1} parent=5 // pred_fallthru
        _
      %p293 = scmp.le.s32.totalorder 1, %s21
      %p294 = scmp.lt.s32.totalorder %s21, 3
      %p295 = pnand %p293, %p294
      %p296 = pneg %p295
      // Predicated region
      $region37: #{tpu_custom_call.1} parent=5 // pred_check
        _
      $region38: #{tpu_custom_call.1} parent=5 // pred_check_branch
        %298 = sbr.rel (%p295) target = $region40
      $region39: #{tpu_custom_call.1} parent=5 // pred_region
        %s299 = ssub.s32 %s21, 1
        %s300 = sand.u32 %s48, 1
        %s301 = scalar_lea.sflag [#allocation3], %s300
        %s302 = sand.u32 %s48, 1
        %s303 = smul.addr %s302, 16
        %s304 = scalar_lea.vmem [#allocation2], %s303
        // Predicated region
        $region41: #{tpu_custom_call.1} parent=39 // pred_check
          %p305 = pneg %p61
        $region42: #{tpu_custom_call.1} parent=39 // pred_check_branch
          %307 = sbr.rel (%p305) target = $region44
        $region43: #{tpu_custom_call.1} parent=39 // pred_region
          %308 = dma.done %s301, 256
        $region44: #{tpu_custom_call.1} parent=39 // pred_fallthru
          _
        // Predicated region
        $region45: #{tpu_custom_call.1} parent=39 // pred_check
          %p309 = pneg %p124
        $region46: #{tpu_custom_call.1} parent=39 // pred_check_branch
          %311 = sbr.rel (%p309) target = $region48
        $region47: #{tpu_custom_call.1} parent=39 // pred_region
          %312 = dma.done [#allocation6], 256
        $region48: #{tpu_custom_call.1} parent=39 // pred_fallthru
          _
        %s313 = sand.u32 %s48, 1
        %s314 = scalar_lea.sflag [#allocation3], %s313
        %s315 = sand.u32 %s48, 1
        %s316 = smul.addr %s315, 16
        %s317 = scalar_lea.vmem [#allocation2], %s316
        %p318 = pneg %p61
        %p319 = pneg %p58
        %p320 = pneg %p82
        %p321 = pneg %p79
        %p322 = pneg %p103
        %p323 = pneg %p100
        %p324 = pneg %p124
        %p325 = pneg %p121
        %p326 = pneg %p145
        %p327 = pneg %p142
        %p328 = pneg %p173
        %p329 = pneg %p170
        %p330 = scmp.lt.s32.totalorder %s30, 1
        %s331 = scalar_select %p330, %s30, 1
        %p332 = scmp.lt.s32.totalorder %s31, 0
        %s333 = scalar_select %p332, %s31, 0
        %s334 = smul.addr %s331, 4
        %s335 = sadd.s32 %s333, %s334
        %s336 = smul.addr %s335, 8
        %s337 = scalar_lea.vmem %s5, %s336
        %p338 = pneg %p201
        %p339 = pneg %p198
        %p340 = scmp.lt.s32.totalorder %s30, 1
        %s341 = scalar_select %p340, %s30, 1
        %p342 = scmp.lt.s32.totalorder %s31, 0
        %s343 = scalar_select %p342, %s31, 0
        %s344 = smul.addr %s341, 4
        %s345 = sadd.s32 %s343, %s344
        %s346 = smul.addr %s345, 8
        %s347 = scalar_lea.vmem %s6, %s346
        %p348 = pneg %p229
        %p349 = pneg %p226
        %s350 = sand.u32 %s216, 1
        %s351 = scalar_lea.sflag [#allocation4], %s350
        %s352 = sand.u32 %s216, 1
        %s353 = smul.addr %s352, 16
        %s354 = scalar_lea.vmem [#allocation7], %s353
        %s355 = smul.u32 2, %s31
        %p356 = scmp.lt.s32.totalorder %s30, 1
        %s357 = scalar_select %p356, %s30, 1
        %p358 = scmp.lt.s32.totalorder %s31, 0
        %s359 = scalar_select %p358, %s31, 0
        %s360 = smul.addr %s357, 4
        %s361 = sadd.s32 %s359, %s360
        %s362 = smul.addr %s361, 8
        %s363 = scalar_lea.vmem %s5, %s362
        %p364 = scmp.lt.s32.totalorder %s30, 1
        %s365 = scalar_select %p364, %s30, 1
        %p366 = scmp.lt.s32.totalorder %s31, 0
        %s367 = scalar_select %p366, %s31, 0
        %s368 = smul.addr %s365, 4
        %s369 = sadd.s32 %s367, %s368
        %s370 = smul.addr %s369, 8
        %s371 = scalar_lea.vmem %s6, %s370
        %s372 = smul.u32 2, %s31
        %v374 = vld [vmem:[%s304] sm:$0xff]
        %v375 = vld [vmem:[%s304 + $0x8] sm:$0xff]
        %v376 = vld [vmem:[%s1] sm:$0x1]
        %v377 = vld [vmem:[%s2] sm:$0x1]
        %vm378 = vcmask 261120
        %v379 = vsel %vm378, %v374, 0.0
        %380 = vadd.xlane.f32.xlu0 %v379
        %v381 = vpop.xlane.xlu0 %380
        %v382 = vsel %vm378, %v375, 0.0
        %383 = vadd.xlane.f32.xlu0 %v382
        %v384 = vpop.xlane.xlu0 %383
        %v385 = vrcp.pop 32.0
        %v386 = vmul.f32 %v381, %v385
        %v387 = vmul.f32 %v384, %v385
        %v388 = vsub.f32 %v374, %v386
        %v389 = vsub.f32 %v375, %v387
        %v390 = vmul.f32 %v388, %v388
        %v391 = vmul.f32 %v389, %v389
        %v392 = vsel %vm378, %v390, 0.0
        %393 = vadd.xlane.f32.xlu0 %v392
        %v394 = vpop.xlane.xlu0 %393
        %v395 = vsel %vm378, %v391, 0.0
        %396 = vadd.xlane.f32.xlu0 %v395
        %v397 = vpop.xlane.xlu0 %396
        %v398 = vmul.f32 %v394, %v385
        %v399 = vmul.f32 %v397, %v385
        %v400 = vadd.f32 %v398, 1e-05
        %v401 = vadd.f32 %v399, 1e-05
        %v402 = vrsqrt.pop %v400
        %v403 = vrsqrt.pop %v401
        %v404 = vmul.f32 %v388, %v402
        %v405 = vmul.f32 %v389, %v403
        %v407 = vlaneseq
        %v408 = vshrl.u32 %v407, 7
        %v409 = vsub.s32 0, %v408
        %v410 = vrot.slane %v376, %v409
        %v412 = vmul.f32 %v404, %v410
        %v413 = vmul.f32 %v405, %v410
        %v415 = vlaneseq
        %v416 = vshrl.u32 %v415, 7
        %v417 = vsub.s32 0, %v416
        %v418 = vrot.slane %v377, %v417
        %v420 = vadd.f32 %v412, %v418
        %v421 = vadd.f32 %v413, %v418
        %v422 = vpack.c.bf16 %v421, %v420
        %v423 = vld [vmem:[#allocation5] sm:$0xf]
        %v424 = vld [vmem:[#allocation5 + $0x4] sm:$0xf]
        %v425 = vld [vmem:[#allocation5 + $0x8] sm:$0xf]
        %v426 = vld [vmem:[#allocation5 + $0xc] sm:$0xf]
        %v427 = vld [vmem:[%s4] sm:$0x1]
        %v429 = vlaneseq
        %v430 = vshrl.u32 %v429, 7
        %v431 = vsub.s32 0, %v430
        %v432 = vrot.slane %v427, %v431
        %v438 = vunpack.c.l.b16 %v423
        %v439 = vunpack.c.l.b16 %v424
        %v440 = vunpack.c.l.b16 %v425
        %v441 = vunpack.c.l.b16 %v426
        %v442 = vpack.c.b16 %v439, %v438
        %v443 = vpack.c.b16 %v441, %v440
        %v447 = vsel %vm378, %v422, 0
        %449 = vmatprep.subr.bf16.mxu0 0
        %450 = vmatpush1.bf16.msra.mxu0 0
        %451 = vmatprep.subr.bf16.mxu0 0
        %452 = vmatpush1.bf16.msra.mxu0 0
        %453 = vmatprep.subr.bf16.mxu0 0
        %454 = vmatpush1.bf16.msra.mxu0 0
        %455 = vmatprep.subr.bf16.mxu0 0
        %456 = vmatpush1.bf16.msra.mxu0 0
        %457 = vmatprep.subr.bf16.mxu0 0
        %458 = vmatpush1.bf16.msra.mxu0 0
        %459 = vmatprep.subr.bf16.mxu0 0
        %460 = vmatpush1.bf16.msra.mxu0 0
        %461 = vmatprep.subr.bf16.mxu0 0
        %462 = vmatpush1.bf16.msra.mxu0 %v443
        %463 = vmatprep.subr.bf16.mxu0 0
        %464 = vmatpush1.bf16.msra.mxu0 %v442
        %465 = vmatprep.subr.bf16.mxu0 0
        %466 = vmatpush2.bf16.msra.mxu0 0
        %467 = vmatprep.subr.bf16.mxu0 0
        %468 = vmatpush2.bf16.msra.mxu0 0
        %469 = vmatprep.subr.bf16.mxu0 0
        %470 = vmatpush2.bf16.msra.mxu0 0
        %471 = vmatprep.subr.bf16.mxu0 0
        %472 = vmatpush2.bf16.msra.mxu0 0
        %473 = vmatprep.subr.bf16.mxu0 0
        %474 = vmatpush2.bf16.msra.mxu0 0
        %475 = vmatprep.subr.bf16.mxu0 0
        %476 = vmatpush2.bf16.msra.mxu0 0
        %477 = vmatprep.subr.bf16.mxu0 0
        %478 = vmatpush2.bf16.msra.mxu0 0
        %479 = vmatprep.subr.bf16.mxu0 0
        %480 = vmatpush2.bf16.msra.mxu0 0
        %481 = vmatprep.mubr.bf16.mxu0 0
        %482 = vmatmul.mubr.bf16.gmra.mxu0 %v447
        %v483 = vpop.f32.mrf.mxu0
        %v484 = vadd.f32 %v432, %v483
        %v485 = vpop.f32.mrf.mxu0
        %v486 = vpop.f32.mrf.mxu0
        %v487 = vadd.f32 %v432, %v486
        %v488 = vpop.f32.mrf.mxu0
        %489 = vdwg.mxu0
        %490 = vxpose.xlu0.b32.start [1/16] %v484, 128
        %491 = vxpose.xlu0.b32.cont [2/16] %v487, 128
        %492 = vxpose.xlu0.b32.cont [3/16] 0.0, 128
        %493 = vxpose.xlu0.b32.cont [4/16] 0.0, 128
        %494 = vxpose.xlu0.b32.cont [5/16] 0.0, 128
        %495 = vxpose.xlu0.b32.cont [6/16] 0.0, 128
        %496 = vxpose.xlu0.b32.cont [7/16] 0.0, 128
        %497 = vxpose.xlu0.b32.cont [8/16] 0.0, 128
        %498 = vxpose.xlu0.b32.cont [9/16] 0.0, 128
        %499 = vxpose.xlu0.b32.cont [10/16] 0.0, 128
        %500 = vxpose.xlu0.b32.cont [11/16] 0.0, 128
        %501 = vxpose.xlu0.b32.cont [12/16] 0.0, 128
        %502 = vxpose.xlu0.b32.cont [13/16] 0.0, 128
        %503 = vxpose.xlu0.b32.cont [14/16] 0.0, 128
        %504 = vxpose.xlu0.b32.cont [15/16] 0.0, 128
        %505 = vxpose.xlu0.b32.end [16/16] 0.0, 128
        %v506 = vpop.trf.xlu0
        %v507 = vpop.trf.xlu0
        %v508 = vpop.trf.xlu0
        %v509 = vpop.trf.xlu0
        %v510 = vpop.trf.xlu0
        %v511 = vpop.trf.xlu0
        %v512 = vpop.trf.xlu0
        %v513 = vpop.trf.xlu0
        %v514 = vpop.trf.xlu0
        %v515 = vpop.trf.xlu0
        %v516 = vpop.trf.xlu0
        %v517 = vpop.trf.xlu0
        %v518 = vpop.trf.xlu0
        %v519 = vpop.trf.xlu0
        %v520 = vpop.trf.xlu0
        %v521 = vpop.trf.xlu0
        %vm522 = vcmask 130048
        %523 = vst.msk [vmem:[%s363] sm:$0xff] %vm522, %v506
        %524 = vst.msk [vmem:[%s363 + $0x8] sm:$0xff] %vm522, %v507
        %525 = vst.msk [vmem:[%s363 + $0x10] sm:$0xff] %vm522, %v508
        %526 = vst.msk [vmem:[%s363 + $0x18] sm:$0xff] %vm522, %v509
        %527 = vst.msk [vmem:[%s371] sm:$0xff] %vm522, %v510
        %528 = vst.msk [vmem:[%s371 + $0x8] sm:$0xff] %vm522, %v511
        %529 = vst.msk [vmem:[%s371 + $0x10] sm:$0xff] %vm522, %v512
        %530 = vst.msk [vmem:[%s371 + $0x18] sm:$0xff] %vm522, %v513
        %533 = vrot.lane.b32.xlu0 %v484, 64
        %v534 = vpop.permute.xlu0 %533
        %535 = vrot.lane.b32.xlu0 %v487, 64
        %v536 = vpop.permute.xlu0 %535
        %539 = vst.msk [vmem:[%s354] sm:$0xff] %vm378, %v534
        %540 = vst.msk [vmem:[%s354 + $0x8] sm:$0xff] %vm378, %v536
        %p541 = scmp.lt.s32.totalorder %s30, 1
        %s542 = scalar_select %p541, %s30, 1
        %p543 = scmp.lt.s32.totalorder %s31, 0
        %s544 = scalar_select %p543, %s31, 0
        %s545 = smul.addr %s542, 4
        %s546 = sadd.s32 %s544, %s545
        %s547 = smul.addr %s546, 8
        %s548 = scalar_lea.vmem %s5, %s547
        %p549 = scmp.lt.s32.totalorder %s30, 1
        %s550 = scalar_select %p549, %s30, 1
        %p551 = scmp.lt.s32.totalorder %s31, 0
        %s552 = scalar_select %p551, %s31, 0
        %s553 = smul.addr %s550, 4
        %s554 = sadd.s32 %s552, %s553
        %s555 = smul.addr %s554, 8
        %s556 = scalar_lea.vmem %s6, %s555
        %s557 = sand.u32 %s216, 1
        %s558 = scalar_lea.sflag [#allocation4], %s557
        %s559 = sand.u32 %s216, 1
        %s560 = smul.addr %s559, 16
        %s561 = scalar_lea.vmem [#allocation7], %s560
        // Predicated region
        $region49: #{tpu_custom_call.1} parent=39 // pred_check
          %p562 = pneg %p170
        $region50: #{tpu_custom_call.1} parent=39 // pred_check_branch
          %564 = sbr.rel (%p562) target = $region52
        $region51: #{tpu_custom_call.1} parent=39 // pred_region
          _
        $region52: #{tpu_custom_call.1} parent=39 // pred_fallthru
          _
        // Predicated region
        $region53: #{tpu_custom_call.1} parent=39 // pred_check
          %p565 = pneg %p198
        $region54: #{tpu_custom_call.1} parent=39 // pred_check_branch
          %567 = sbr.rel (%p565) target = $region56
        $region55: #{tpu_custom_call.1} parent=39 // pred_region
          _
        $region56: #{tpu_custom_call.1} parent=39 // pred_fallthru
          _
        // Predicated region
        $region57: #{tpu_custom_call.1} parent=39 // pred_check
          %p568 = pneg %p226
        $region58: #{tpu_custom_call.1} parent=39 // pred_check_branch
          %570 = sbr.rel (%p568) target = $region60
        $region59: #{tpu_custom_call.1} parent=39 // pred_region
          %s571 = smul.u32 2, %s31
          %s573 = ssub.s32 256, 256
          %574 = vsyncadd %s558, %s573
          %s575 = smul.addr %s30, 2
          %s576 = sadd.s32 %s571, %s575
          %s577 = smul.addr %s576, 128
          %s578 = scalar_lea.hbm %s7, %s577
          %s579 = sshll.u32 %s561, 4
          %s580 = int_to_ptr.vmem [resolvable:$true] %s579
          %585 = dma.vmem_to_hbm [thread:$0]  %s580, 256, %s578, %s558, 128, 128, 8
        $region60: #{tpu_custom_call.1} parent=39 // pred_fallthru
          _
      $region40: #{tpu_custom_call.1} parent=5 // pred_fallthru
        _
      %p586 = scmp.le.s32.totalorder 2, %s21
      // Predicated region
      $region61: #{tpu_custom_call.1} parent=5 // pred_check
        %p587 = pneg %p586
      $region62: #{tpu_custom_call.1} parent=5 // pred_check_branch
        %589 = sbr.rel (%p587) target = $region64
      $region63: #{tpu_custom_call.1} parent=5 // pred_region
        %s590 = ssub.s32 %s21, 2
        // Predicated region
        $region65: #{tpu_custom_call.1} parent=63 // pred_check
          %p591 = pneg %p176
        $region66: #{tpu_custom_call.1} parent=63 // pred_check_branch
          %593 = sbr.rel (%p591) target = $region68
        $region67: #{tpu_custom_call.1} parent=63 // pred_region
          %p594 = scmp.lt.s32.totalorder %s32, 1
          %s595 = scalar_select %p594, %s32, 1
          %p596 = scmp.lt.s32.totalorder %s33, 0
          %s597 = scalar_select %p596, %s33, 0
          %s598 = smul.addr %s595, 4
          %s599 = sadd.s32 %s597, %s598
          %s600 = smul.addr %s599, 8
          %s601 = scalar_lea.vmem %s5, %s600
        $region68: #{tpu_custom_call.1} parent=63 // pred_fallthru
          _
        // Predicated region
        $region69: #{tpu_custom_call.1} parent=63 // pred_check
          %p602 = pneg %p204
        $region70: #{tpu_custom_call.1} parent=63 // pred_check_branch
          %604 = sbr.rel (%p602) target = $region72
        $region71: #{tpu_custom_call.1} parent=63 // pred_region
          %p605 = scmp.lt.s32.totalorder %s32, 1
          %s606 = scalar_select %p605, %s32, 1
          %p607 = scmp.lt.s32.totalorder %s33, 0
          %s608 = scalar_select %p607, %s33, 0
          %s609 = smul.addr %s606, 4
          %s610 = sadd.s32 %s608, %s609
          %s611 = smul.addr %s610, 8
          %s612 = scalar_lea.vmem %s6, %s611
        $region72: #{tpu_custom_call.1} parent=63 // pred_fallthru
          _
        // Predicated region
        $region73: #{tpu_custom_call.1} parent=63 // pred_check
          %p613 = pneg %p232
        $region74: #{tpu_custom_call.1} parent=63 // pred_check_branch
          %615 = sbr.rel (%p613) target = $region76
        $region75: #{tpu_custom_call.1} parent=63 // pred_region
          %s616 = sand.u32 %s217, 1
          %s617 = scalar_lea.sflag [#allocation4], %s616
          %s618 = sand.u32 %s217, 1
          %s619 = smul.addr %s618, 16
          %s620 = scalar_lea.vmem [#allocation7], %s619
          %621 = dma.done %s617, 256
        $region76: #{tpu_custom_call.1} parent=63 // pred_fallthru
          _
      $region64: #{tpu_custom_call.1} parent=5 // pred_fallthru
        _
    $region6: #{tpu_custom_call.1} parent=1 // loop_footer
      %s25 = sadd.s32 1, %s21
    $region7: #{tpu_custom_call.1} parent=1 // loop_footer_branch
      %20 = sbr.rel target = $region3
    $region8: #{tpu_custom_call.1} parent=1 // loop_exit
      _
    %622 = vsyncpa [#allocation3], 1
    %s623 = scalar_lea.sflag [#allocation3], 1
    %624 = vsyncpa %s623, 1
    %625 = vsyncpa [#allocation6], 1
    %626 = vsyncpa [#allocation4], 1
    %s627 = scalar_lea.sflag [#allocation4], 1
    %628 = vsyncpa %s627, 1

</llo_original>
